<compile_context>
chip_gen: v7x
topology: tpu7x:2x2x1
jax: 0.10.0
libtpu: 0.0.40
codegen_flags: <defaults>
</compile_context>

<pallas_src>
import math

import jax
import jax.numpy as jnp
from jax.experimental import pallas as pl
from jax.experimental.pallas import tpu as pltpu

M_CONST = 0.4
H_CONST = 0.333
S_CONST = 64.0
T_ALPHA = 1.0
EPS = 0.001
COS_LO = math.cos(EPS)              # value when theta+g clips at eps
COS_HI = math.cos(math.pi - EPS)    # value when theta+g clips at pi-eps


def _round_up(x, m):
    return ((x + m - 1) // m) * m


def _choose_tile_n(C):
    """Largest class tile <= 1024 lanes that divides round_up(C, 128)."""
    c128 = _round_up(C, 128)
    cap = min(1024, c128)
    best = 128
    for t in range(cap, 127, -128):
        if c128 % t == 0:
            best = t
            break
    if best >= 512 or c128 <= 1024:
        return best
    return cap          # no good divisor: accept < cap columns of padding


def _vmem_limit_bytes(B, E, tile_n):
    """Honest per-step VMEM estimate (double-buffered streams + f32 temps)."""
    w = 2 * E * tile_n * 2            # bf16 weight tile, double-buffered
    emb = 2 * B * E * 2               # bf16 embeddings (resident, 2 buffers)
    outb = 2 * B * tile_n * 4         # f32 output tile, double-buffered
    side = 2 * (tile_n * 8 + B * 40)  # inv-norms, col ids, labels, row params
    temps = 10 * B * tile_n * 4       # cosine / onehot / selects etc.
    est = w + emb + outb + side + temps + (2 << 20)
    return int(min(64 << 20, max(est, 16 << 20)))


def _cwl_kernel(emb_ref, w_ref, invn_ref, col_ref, lbl_ref, row_ref, out_ref):
    # Hot path: native bf16 x bf16 MXU matmul with f32 accumulation, scaled by
    # precomputed f32 inverse column norms (no per-weight-element VALU work).
    dots = jnp.dot(emb_ref[...], w_ref[...], preferred_element_type=jnp.float32)
    cosine = jnp.clip(dots * invn_ref[...], -1.0 + EPS, 1.0 - EPS)

    col = col_ref[...]                       # (1, TN) int32 absolute class ids
    lbl = lbl_ref[...]                       # (B, 1)  int32 labels
    tn = out_ref.shape[1]
    col_lo = col[0:1, 0:1]                   # this tile's first class id
    in_tile = (lbl >= col_lo) & (lbl < col_lo + tn)          # (B, 1)
    has_label = jnp.sum(in_tile.astype(jnp.int32)) > 0       # scalar predicate

    @pl.when(jnp.logical_not(has_label))
    def _():
        # No label column lands in this tile: logits are just s * cosine.
        out_ref[...] = (cosine * S_CONST).astype(out_ref.dtype)

    @pl.when(has_label)
    def _():
        onehot = col == lbl                                   # (B, TN)
        row = row_ref[...]                                    # (B, 8) per-row params
        cg = jnp.where(onehot, row[:, 0:1], 1.0)              # cos(g_angular)
        sg = jnp.where(onehot, row[:, 1:2], 0.0)              # sin(g_angular)
        thr_hi = jnp.where(onehot, row[:, 2:3], 2.0)          # cosine-space clip thresholds
        thr_lo = jnp.where(onehot, row[:, 3:4], -2.0)
        m_cos = jnp.where(onehot, row[:, 4:5], 0.0)           # g_add

        # cos(theta + g) via the angle-addition identity; the thresholds
        # reproduce torch.clip(theta + g, eps, pi - eps) exactly.
        sin_t = jnp.sqrt(jnp.maximum(1.0 - cosine * cosine, 0.0))
        val = cosine * cg - sin_t * sg
        val = jnp.where(cosine > thr_hi, COS_LO, val)         # theta + g < eps
        val = jnp.where(cosine < thr_lo, COS_HI, val)         # theta + g > pi - eps
        out_ref[...] = ((val - m_cos) * S_CONST).astype(out_ref.dtype)


def cwlface_prepare(weight, tile_n=None):
    """One-time weight preprocessing (cache/reuse across training steps):
    bf16 streaming copy, f32 column norms / inverse norms, int32 column ids."""
    E, C = weight.shape
    if tile_n is None:
        tile_n = _choose_tile_n(C)
    c_pad = _round_up(C, tile_n)

    w32 = weight.astype(jnp.float32)
    col_norm = jnp.sqrt(jnp.sum(w32 * w32, axis=0))        # == torch.norm(kernel, dim=0)
    inv_norm = 1.0 / col_norm
    w_bf16 = weight.astype(jnp.bfloat16)
    if c_pad != C:
        w_bf16 = jnp.pad(w_bf16, ((0, 0), (0, c_pad - C)))
        inv_norm = jnp.pad(inv_norm, (0, c_pad - C))        # padded cols -> cosine 0
    col_ids = jnp.arange(c_pad, dtype=jnp.int32)            # padded ids >= C never match

    return {
        "w_bf16": w_bf16,
        "inv_norm": inv_norm.reshape(1, c_pad),
        "col_ids": col_ids.reshape(1, c_pad),
        "col_norm": col_norm,
        "tile_n": tile_n,
        "E": E, "C": C, "c_pad": c_pad,
    }


def _unbiased_std(x):
    if x.size <= 1:      # torch's unbiased std would be NaN for a single element
        return jnp.zeros((), jnp.float32)
    return jnp.std(x, ddof=1)


def _per_row_glue(col_norm, norms, label, batch_mean, batch_std):
    """Tiny per-batch scalar math (mirrors the PyTorch forward)."""
    safe_norms = jnp.clip(norms.astype(jnp.float32), 0.001, 100.0)        # (B, 1)
    kernel_mag = col_norm[label]                                          # (B,)
    kernel_mag = jnp.maximum(
        kernel_mag, jnp.mean(kernel_mag) - 2.0 * _unbiased_std(kernel_mag))
    safe_norms = safe_norms / (kernel_mag[:, None] + 1e-5)
    safe_norms = jnp.clip(safe_norms, 0.001, 100.0)

    mean = jnp.mean(safe_norms)
    std = _unbiased_std(safe_norms)
    new_mean = mean * T_ALPHA + (1.0 - T_ALPHA) * batch_mean
    new_std = std * T_ALPHA + (1.0 - T_ALPHA) * batch_std

    margin_scaler = (safe_norms - new_mean) / (new_std + EPS)
    margin_scaler = jnp.clip(margin_scaler * H_CONST, -1.0, 1.0)          # (B, 1)
    g_angular = -M_CONST * margin_scaler
    g_add = M_CONST + M_CONST * margin_scaler
    return g_angular, g_add, new_mean, new_std


def cwlface_forward(prepared, embeddings, norms, label,
                    batch_mean=10.0, batch_std=10.0, out_dtype=jnp.float32):
    """Returns (scaled_cosine_m, new_batch_mean, new_batch_std)."""
    E, C, c_pad = prepared["E"], prepared["C"], prepared["c_pad"]
    tile_n = prepared["tile_n"]
    B = embeddings.shape[0]
    num_tiles = c_pad // tile_n

    g_ang, g_add, new_mean, new_std = _per_row_glue(
        prepared["col_norm"], norms, label, batch_mean, batch_std)

    # Cosine-space clip thresholds reproducing clip(theta + g, eps, pi - eps);
    # +/-2 sentinels disable the corresponding branch.
    lo, hi = EPS, math.pi - EPS
    cg = jnp.cos(g_ang)
    sg = jnp.sin(g_ang)
    thr_hi = jnp.where(lo - g_ang > 0.0, jnp.cos(lo - g_ang), 2.0)
    thr_lo = jnp.where(hi - g_ang < math.pi, jnp.cos(hi - g_ang), -2.0)
    row_params = jnp.concatenate(
        [cg, sg, thr_hi, thr_lo, g_add, jnp.zeros((B, 3), jnp.float32)], axis=1)

    emb_bf16 = embeddings.astype(jnp.bfloat16)          # native bf16 MXU feed
    label_i32 = label.astype(jnp.int32).reshape(B, 1)

    cost = pl.CostEstimate(
        flops=2 * B * E * c_pad, transcendentals=0,
        bytes_accessed=E * c_pad * 2 + B * E * 2 + B * c_pad * 4 + c_pad * 8)

    # TODO(synk): for B >= ~128 add a second "parallel" batch grid axis
    # (class-major order so the weight tile DMA is reused across batch tiles).
    out = pl.pallas_call(
        _cwl_kernel,
        out_shape=jax.ShapeDtypeStruct((B, c_pad), out_dtype),
        grid=(num_tiles,),
        in_specs=[
            pl.BlockSpec((B, E), lambda j: (0, 0)),          # embeddings (resident, bf16)
            pl.BlockSpec((E, tile_n), lambda j: (0, j)),     # bf16 weight stream
            pl.BlockSpec((1, tile_n), lambda j: (0, j)),     # f32 inverse column norms
            pl.BlockSpec((1, tile_n), lambda j: (0, j)),     # int32 class ids
            pl.BlockSpec((B, 1), lambda j: (0, 0)),          # int32 labels (resident)
            pl.BlockSpec((B, 8), lambda j: (0, 0)),          # packed per-row params
        ],
        out_specs=pl.BlockSpec((B, tile_n), lambda j: (0, j)),
        compiler_params=pltpu.CompilerParams(
            dimension_semantics=("parallel",),
            vmem_limit_bytes=_vmem_limit_bytes(B, E, tile_n)),
        cost_estimate=cost,
    )(emb_bf16, prepared["w_bf16"], prepared["inv_norm"],
      prepared["col_ids"], label_i32, row_params)

    logits = out[:, :C] if c_pad != C else out
    return logits, new_mean, new_std


def cwlface_reference(weight, embeddings, norms, label,
                      batch_mean=10.0, batch_std=10.0,
                      matmul_weight=None, matmul_emb=None):
    """Pure-JAX reference mirroring the PyTorch forward (with acos/cos).
    matmul_weight / matmul_emb let tests match the kernel's bf16 matmul while
    keeping the column normalization in f32 (exactly what the kernel does)."""
    w32 = weight.astype(jnp.float32)
    mw = w32 if matmul_weight is None else matmul_weight
    me = embeddings if matmul_emb is None else matmul_emb
    col_norm = jnp.linalg.norm(w32, axis=0, keepdims=True)
    cosine = jnp.clip((me @ mw) / col_norm, -1.0 + EPS, 1.0 - EPS)
    g_ang, g_add, _, _ = _per_row_glue(col_norm[0], norms, label,
                                       batch_mean, batch_std)
    C = weight.shape[1]
    onehot = jax.nn.one_hot(label, C, dtype=jnp.float32)
    m_arc = onehot * g_ang
    theta = jnp.arccos(cosine)
    theta_m = jnp.clip(theta + m_arc, EPS, math.pi - EPS)
    cosine2 = jnp.cos(theta_m)
    m_cos = onehot * g_add
    return (cosine2 - m_cos) * S_CONST


def init_weight(key, embedding_size, classnum):
    # torch: Tensor(E, C).uniform_(-1, 1).renorm_(2, 1, 1e-05).mul_(1e5)
    w = jax.random.uniform(key, (embedding_size, classnum), jnp.float32, -1.0, 1.0)
    cn = jnp.linalg.norm(w, axis=0, keepdims=True)
    maxnorm = 1e-5
    w = w * jnp.where(cn > maxnorm, maxnorm / (cn + 1e-7), 1.0)
    return w * 1e5


if __name__ == "__main__":
    B, E, C = 8, 32, 512   # small shapes: batch=8, embedding=32, classnum=512

    key = jax.random.PRNGKey(0)
    kw, ke, kn, kl = jax.random.split(key, 4)

    weight = init_weight(kw, E, C)                                   # (E, C)
    emb = jax.random.normal(ke, (B, E), jnp.float32)
    emb = emb / jnp.linalg.norm(emb, axis=1, keepdims=True)          # unit embeddings
    norms = jax.random.uniform(kn, (B, 1), jnp.float32, 1.0, 30.0)   # pre-norm magnitudes
    label = jax.random.randint(kl, (B,), 0, C, jnp.int32)

    prepared = cwlface_prepare(weight)       # one-time: bf16 cast + column norms
    out, bm, bs = cwlface_forward(prepared, emb, norms, label)
    out = jax.block_until_ready(out)

    # Reference with operands matched to the kernel's bf16 stream (isolates
    # the kernel math from the deliberate quantization), plus a loose check
    # against the pure-f32 reference.
    w_q = weight.astype(jnp.bfloat16).astype(jnp.float32)
    e_q = emb.astype(jnp.bfloat16).astype(jnp.float32)
    ref_q = jax.block_until_ready(
        cwlface_reference(weight, emb, norms, label,
                          matmul_weight=w_q, matmul_emb=e_q))
    ref_f = jax.block_until_ready(cwlface_reference(weight, emb, norms, label))

    err_q = float(jnp.max(jnp.abs(out - ref_q)))
    err_f = float(jnp.max(jnp.abs(out - ref_f)))
    assert out.shape == (B, C) and out.dtype == jnp.float32
    assert err_q < 5e-2, f"mismatch vs bf16-matched reference: {err_q}"
    assert err_f < 1.0, f"mismatch vs f32 reference beyond bf16 quantization: {err_f}"

    print("KERNEL_OK")
</pallas_src>

<mosaic_0001>
module attributes {stable_mosaic.version = 11 : i64} {
  func.func @_cwl_kernel(%arg0: i32, %arg1: memref<8x32xbf16, #tpu.memory_space<vmem>>, %arg2: memref<32x512xbf16, #tpu.memory_space<vmem>>, %arg3: memref<1x512xf32, #tpu.memory_space<vmem>>, %arg4: memref<1x512xi32, #tpu.memory_space<vmem>>, %arg5: memref<8x1xi32, #tpu.memory_space<vmem>>, %arg6: memref<8x8xf32, #tpu.memory_space<vmem>>, %arg7: memref<8x512xf32, #tpu.memory_space<vmem>>) attributes {dimension_semantics = [#tpu.dimension_semantics<parallel>], iteration_bounds = array<i64: 1>, scalar_prefetch = 0 : i64, scratch_operands = 0 : i64, tpu.core_type = #tpu.core_type<tc>, window_params = [{pipeline_mode = #tpu.pipeline_mode<synchronous>, transform_indices = @transform_0, window_bounds = array<i64: 8, 32>}, {transform_indices = @transform_1, window_bounds = array<i64: 32, 512>}, {transform_indices = @transform_2, window_bounds = array<i64: 1, 512>}, {transform_indices = @transform_3, window_bounds = array<i64: 1, 512>}, {pipeline_mode = #tpu.pipeline_mode<synchronous>, transform_indices = @transform_4, window_bounds = array<i64: 8, 1>}, {pipeline_mode = #tpu.pipeline_mode<synchronous>, transform_indices = @transform_5, window_bounds = array<i64: 8, 8>}, {transform_indices = @transform_6, window_bounds = array<i64: 8, 512>}]} {
    %c0 = arith.constant 0 : index
    %c0_0 = arith.constant 0 : index
    %0 = vector.load %arg1[%c0, %c0_0] : memref<8x32xbf16, #tpu.memory_space<vmem>>, vector<8x32xbf16>
    %c0_1 = arith.constant 0 : index
    %c0_2 = arith.constant 0 : index
    %1 = vector.load %arg2[%c0_1, %c0_2] : memref<32x512xbf16, #tpu.memory_space<vmem>>, vector<32x512xbf16>
    %cst = arith.constant dense<0.000000e+00> : vector<8x512xf32>
    %2 = tpu.matmul %0, %1, %cst {dimension_numbers = #tpu.dot_dimension_numbers<[1], [0], [0], [1], [0, 0, 1, 1], [], []>} : vector<8x32xbf16>, vector<32x512xbf16>, vector<8x512xf32> -> vector<8x512xf32>
    %c0_3 = arith.constant 0 : index
    %c0_4 = arith.constant 0 : index
    %3 = vector.load %arg3[%c0_3, %c0_4] : memref<1x512xf32, #tpu.memory_space<vmem>>, vector<1x512xf32>
    %4 = vector.broadcast %3 : vector<1x512xf32> to vector<8x512xf32>
    %5 = arith.mulf %2, %4 : vector<8x512xf32>
    %cst_5 = arith.constant -9.990000e-01 : f32
    %cst_6 = arith.constant 9.990000e-01 : f32
    %6 = vector.broadcast %cst_5 : f32 to vector<8x512xf32>
    %7 = arith.maximumf %6, %5 : vector<8x512xf32>
    %8 = vector.broadcast %cst_6 : f32 to vector<8x512xf32>
    %9 = arith.minimumf %8, %7 : vector<8x512xf32>
    %c0_7 = arith.constant 0 : index
    %c0_8 = arith.constant 0 : index
    %10 = vector.load %arg4[%c0_7, %c0_8] : memref<1x512xi32, #tpu.memory_space<vmem>>, vector<1x512xi32>
    %c0_9 = arith.constant 0 : index
    %c0_10 = arith.constant 0 : index
    %11 = vector.load %arg5[%c0_9, %c0_10] : memref<8x1xi32, #tpu.memory_space<vmem>>, vector<8x1xi32>
    %12 = vector.extract_strided_slice %10 {offsets = [0, 0], sizes = [1, 1], strides = [1, 1]} : vector<1x512xi32> to vector<1x1xi32>
    %13 = vector.broadcast %12 : vector<1x1xi32> to vector<8x1xi32>
    %14 = arith.cmpi sge, %11, %13 : vector<8x1xi32>
    %c512_i32 = arith.constant 512 : i32
    %15 = vector.broadcast %c512_i32 : i32 to vector<1x1xi32>
    %16 = arith.addi %12, %15 : vector<1x1xi32>
    %17 = vector.broadcast %16 : vector<1x1xi32> to vector<8x1xi32>
    %18 = arith.cmpi slt, %11, %17 : vector<8x1xi32>
    %19 = arith.andi %14, %18 : vector<8x1xi1>
    %20 = arith.extui %19 : vector<8x1xi1> to vector<8x1xi32>
    %21 = vector.shape_cast %20 : vector<8x1xi32> to vector<1x8x1xi32>
    %cst_11 = arith.constant dense<0> : vector<1xi32>
    %22 = vector.multi_reduction <add>, %21, %cst_11 [1, 2] : vector<1x8x1xi32> to vector<1xi32>
    %23 = vector.shape_cast %22 : vector<1xi32> to vector<1x1x1xi32>
    %24 = vector.extract %23[0, 0, 0] : i32 from vector<1x1x1xi32>
    %c0_i32 = arith.constant 0 : i32
    %25 = arith.cmpi sgt, %24, %c0_i32 : i32
    %true = arith.constant true
    %26 = arith.xori %25, %true : i1
    %27 = arith.extui %26 : i1 to i32
    %c0_i32_12 = arith.constant 0 : i32
    %28 = arith.cmpi ne, %27, %c0_i32_12 : i32
    scf.if %28 {
      %cst_14 = arith.constant 6.400000e+01 : f32
      %31 = vector.broadcast %cst_14 : f32 to vector<8x512xf32>
      %32 = arith.mulf %9, %31 : vector<8x512xf32>
      %c0_15 = arith.constant 0 : index
      %c0_16 = arith.constant 0 : index
      %33 = vector.load %arg7[%c0_15, %c0_16] : memref<8x512xf32, #tpu.memory_space<vmem>>, vector<8x512xf32>
      tpu.vector_store %arg7[%c0_15, %c0_16], %32 {strides = array<i32>} : memref<8x512xf32, #tpu.memory_space<vmem>>, vector<8x512xf32>,
    } else {
    }
    %29 = arith.extui %25 : i1 to i32
    %c0_i32_13 = arith.constant 0 : i32
    %30 = arith.cmpi ne, %29, %c0_i32_13 : i32
    scf.if %30 {
      %31 = vector.broadcast %10 : vector<1x512xi32> to vector<8x512xi32>
      %32 = vector.broadcast %11 : vector<8x1xi32> to vector<8x512xi32>
      %33 = arith.cmpi eq, %31, %32 : vector<8x512xi32>
      %c0_14 = arith.constant 0 : index
      %c0_15 = arith.constant 0 : index
      %34 = vector.load %arg6[%c0_14, %c0_15] : memref<8x8xf32, #tpu.memory_space<vmem>>, vector<8x8xf32>
      %35 = vector.extract_strided_slice %34 {offsets = [0, 0], sizes = [8, 1], strides = [1, 1]} : vector<8x8xf32> to vector<8x1xf32>
      %cst_16 = arith.constant 1.000000e+00 : f32
      %36 = vector.shape_cast %35 : vector<8x1xf32> to vector<8x1xf32>
      %37 = vector.broadcast %36 : vector<8x1xf32> to vector<8x512xf32>
      %38 = vector.broadcast %cst_16 : f32 to vector<8x512xf32>
      %39 = arith.select %33, %37, %38 : vector<8x512xi1>, vector<8x512xf32>
      %40 = vector.extract_strided_slice %34 {offsets = [0, 1], sizes = [8, 1], strides = [1, 1]} : vector<8x8xf32> to vector<8x1xf32>
      %cst_17 = arith.constant 0.000000e+00 : f32
      %41 = vector.shape_cast %40 : vector<8x1xf32> to vector<8x1xf32>
      %42 = vector.broadcast %41 : vector<8x1xf32> to vector<8x512xf32>
      %43 = vector.broadcast %cst_17 : f32 to vector<8x512xf32>
      %44 = arith.select %33, %42, %43 : vector<8x512xi1>, vector<8x512xf32>
      %45 = vector.extract_strided_slice %34 {offsets = [0, 2], sizes = [8, 1], strides = [1, 1]} : vector<8x8xf32> to vector<8x1xf32>
      %cst_18 = arith.constant 2.000000e+00 : f32
      %46 = vector.shape_cast %45 : vector<8x1xf32> to vector<8x1xf32>
      %47 = vector.broadcast %46 : vector<8x1xf32> to vector<8x512xf32>
      %48 = vector.broadcast %cst_18 : f32 to vector<8x512xf32>
      %49 = arith.select %33, %47, %48 : vector<8x512xi1>, vector<8x512xf32>
      %50 = vector.extract_strided_slice %34 {offsets = [0, 3], sizes = [8, 1], strides = [1, 1]} : vector<8x8xf32> to vector<8x1xf32>
      %cst_19 = arith.constant -2.000000e+00 : f32
      %51 = vector.shape_cast %50 : vector<8x1xf32> to vector<8x1xf32>
      %52 = vector.broadcast %51 : vector<8x1xf32> to vector<8x512xf32>
      %53 = vector.broadcast %cst_19 : f32 to vector<8x512xf32>
      %54 = arith.select %33, %52, %53 : vector<8x512xi1>, vector<8x512xf32>
      %55 = vector.extract_strided_slice %34 {offsets = [0, 4], sizes = [8, 1], strides = [1, 1]} : vector<8x8xf32> to vector<8x1xf32>
      %cst_20 = arith.constant 0.000000e+00 : f32
      %56 = vector.shape_cast %55 : vector<8x1xf32> to vector<8x1xf32>
      %57 = vector.broadcast %56 : vector<8x1xf32> to vector<8x512xf32>
      %58 = vector.broadcast %cst_20 : f32 to vector<8x512xf32>
      %59 = arith.select %33, %57, %58 : vector<8x512xi1>, vector<8x512xf32>
      %60 = arith.mulf %9, %9 : vector<8x512xf32>
      %cst_21 = arith.constant 1.000000e+00 : f32
      %61 = vector.broadcast %cst_21 : f32 to vector<8x512xf32>
      %62 = arith.subf %61, %60 : vector<8x512xf32>
      %cst_22 = arith.constant 0.000000e+00 : f32
      %63 = vector.broadcast %cst_22 : f32 to vector<8x512xf32>
      %64 = arith.maximumf %62, %63 : vector<8x512xf32>
      %65 = math.sqrt %64 : vector<8x512xf32>
      %66 = arith.mulf %9, %39 : vector<8x512xf32>
      %67 = arith.mulf %65, %44 : vector<8x512xf32>
      %68 = arith.subf %66, %67 : vector<8x512xf32>
      %69 = arith.cmpf ogt, %9, %49 : vector<8x512xf32>
      %cst_23 = arith.constant 0.999999523 : f32
      %70 = vector.broadcast %cst_23 : f32 to vector<8x512xf32>
      %71 = arith.select %69, %70, %68 : vector<8x512xi1>, vector<8x512xf32>
      %72 = arith.cmpf olt, %9, %54 : vector<8x512xf32>
      %cst_24 = arith.constant -0.999999523 : f32
      %73 = vector.broadcast %cst_24 : f32 to vector<8x512xf32>
      %74 = arith.select %72, %73, %71 : vector<8x512xi1>, vector<8x512xf32>
      %75 = arith.subf %74, %59 : vector<8x512xf32>
      %cst_25 = arith.constant 6.400000e+01 : f32
      %76 = vector.broadcast %cst_25 : f32 to vector<8x512xf32>
      %77 = arith.mulf %75, %76 : vector<8x512xf32>
      %c0_26 = arith.constant 0 : index
      %c0_27 = arith.constant 0 : index
      %78 = vector.load %arg7[%c0_26, %c0_27] : memref<8x512xf32, #tpu.memory_space<vmem>>, vector<8x512xf32>
      tpu.vector_store %arg7[%c0_26, %c0_27], %77 {strides = array<i32>} : memref<8x512xf32, #tpu.memory_space<vmem>>, vector<8x512xf32>,
    } else {
    }
    return
  }
  func.func @transform_0(%arg0: i32) -> (i32, i32) {
    %c0_i32 = arith.constant 0 : i32
    %c0_i32_0 = arith.constant 0 : i32
    %c0_i32_1 = arith.constant 0 : i32
    return %c0_i32, %c0_i32_0 : i32, i32
  }
  func.func @transform_1(%arg0: i32) -> (i32, i32) {
    %c0_i32 = arith.constant 0 : i32
    %c0_i32_0 = arith.constant 0 : i32
    return %c0_i32, %arg0 : i32, i32
  }
  func.func @transform_2(%arg0: i32) -> (i32, i32) {
    %c0_i32 = arith.constant 0 : i32
    %c0_i32_0 = arith.constant 0 : i32
    return %c0_i32, %arg0 : i32, i32
  }
  func.func @transform_3(%arg0: i32) -> (i32, i32) {
    %c0_i32 = arith.constant 0 : i32
    %c0_i32_0 = arith.constant 0 : i32
    return %c0_i32, %arg0 : i32, i32
  }
  func.func @transform_4(%arg0: i32) -> (i32, i32) {
    %c0_i32 = arith.constant 0 : i32
    %c0_i32_0 = arith.constant 0 : i32
    %c0_i32_1 = arith.constant 0 : i32
    return %c0_i32, %c0_i32_0 : i32, i32
  }
  func.func @transform_5(%arg0: i32) -> (i32, i32) {
    %c0_i32 = arith.constant 0 : i32
    %c0_i32_0 = arith.constant 0 : i32
    %c0_i32_1 = arith.constant 0 : i32
    return %c0_i32, %c0_i32_0 : i32, i32
  }
  func.func @transform_6(%arg0: i32) -> (i32, i32) {
    %c0_i32 = arith.constant 0 : i32
    %c0_i32_0 = arith.constant 0 : i32
    return %c0_i32, %arg0 : i32, i32
  }
}

</mosaic_0001>

<llo_original>
// kernel: tpu_custom_call.1
$region0: #{tpu_custom_call.1}
  #allocation0 [shape = 'u32[]', space=smem, size = 0x4, offset = 0x4, fixed_abs, tag = 'smem constant byte address 0x4 - core index']
  #allocation1 [shape = 'u32[144,128]{1,0:T(1,128)}', space=vmem, size = 0x12000, scoped, tag = 'internal scratch']
  %s0 = inlined_call_operand.vmem [shape: bf16[8,32], index: 0, kind: input, shape index: {}]
  %s1 = inlined_call_operand.hbm [shape: bf16[32,512], index: 1, kind: input, shape index: {}]
  %s2 = inlined_call_operand.vmem [shape: f32[1,512], index: 2, kind: input, shape index: {}]
  %s3 = inlined_call_operand.vmem [shape: s32[1,512], index: 3, kind: input, shape index: {}]
  %s4 = inlined_call_operand.vmem [shape: s32[8,1], index: 4, kind: input, shape index: {}]
  %s5 = inlined_call_operand.vmem [shape: f32[8,8], index: 5, kind: input, shape index: {}]
  %s6 = inlined_call_operand.hbm [shape: f32[8,512], index: 6, kind: output, shape index: {}]
  %s7 = sld [smem:[#allocation0]]
  $region46: #{tpu_custom_call.1} parent=0
    _
  %s9 = ssub.s32 1, %s7
  %s10 = scalar_select 0, %s9, %s7
  $region1: #{tpu_custom_call.1} parent=0
    #allocation2 [shape = 'u8[32768]{0}', space=vmem, size = 0x8000, scoped, tag = 'input window, operand 1, single buffered']
    #allocation3 [shape = 's32[1]{0}', space=sflag, size = 0x4, scoped, tag = 'scoped memory for tpu_custom_call.1']
    #allocation4 [shape = 's32[1]{0}', space=sflag, size = 0x4, scoped, tag = 'scoped memory for tpu_custom_call.1']
    #allocation5 [shape = 'u8[16384]{0}', space=vmem, size = 0x4000, scoped, tag = 'output window, operand 0, single buffered']
    %11 = vsyncpa [#allocation3], 0
    %12 = vsyncpa [#allocation4], 0
    // Predicated region
    $region2: #{tpu_custom_call.1} parent=1 // pred_check
      _
    $region3: #{tpu_custom_call.1} parent=1 // pred_check_branch
      %14 = sbr.rel (0) target = $region5
    $region4: #{tpu_custom_call.1} parent=1 // pred_region
      _
    $region5: #{tpu_custom_call.1} parent=1 // pred_fallthru
      _
    // Predicated region
    $region6: #{tpu_custom_call.1} parent=1 // pred_check
      _
    $region7: #{tpu_custom_call.1} parent=1 // pred_check_branch
      %16 = sbr.rel (0) target = $region9
    $region8: #{tpu_custom_call.1} parent=1 // pred_region
      %s18 = ssub.s32 1024, 1024
      %19 = vsyncadd [#allocation3], %s18
      %s20 = sshll.u32 [#allocation2], 4
      %s21 = int_to_ptr.vmem [resolvable:$true] %s20
      %26 = dma.hbm_to_vmem [thread:$0]  %s1, 1024, %s21, [#allocation3], 256, 256, 16
    $region9: #{tpu_custom_call.1} parent=1 // pred_fallthru
      _
    // Predicated region
    $region10: #{tpu_custom_call.1} parent=1 // pred_check
      _
    $region11: #{tpu_custom_call.1} parent=1 // pred_check_branch
      %28 = sbr.rel (0) target = $region13
    $region12: #{tpu_custom_call.1} parent=1 // pred_region
      _
    $region13: #{tpu_custom_call.1} parent=1 // pred_fallthru
      _
    // Predicated region
    $region14: #{tpu_custom_call.1} parent=1 // pred_check
      _
    $region15: #{tpu_custom_call.1} parent=1 // pred_check_branch
      %30 = sbr.rel (0) target = $region17
    $region16: #{tpu_custom_call.1} parent=1 // pred_region
      _
    $region17: #{tpu_custom_call.1} parent=1 // pred_fallthru
      _
    // Predicated region
    $region18: #{tpu_custom_call.1} parent=1 // pred_check
      _
    $region19: #{tpu_custom_call.1} parent=1 // pred_check_branch
      %32 = sbr.rel (0) target = $region21
    $region20: #{tpu_custom_call.1} parent=1 // pred_region
      _
    $region21: #{tpu_custom_call.1} parent=1 // pred_fallthru
      _
    // Predicated region
    $region22: #{tpu_custom_call.1} parent=1 // pred_check
      _
    $region23: #{tpu_custom_call.1} parent=1 // pred_check_branch
      %34 = sbr.rel (0) target = $region25
    $region24: #{tpu_custom_call.1} parent=1 // pred_region
      _
    $region25: #{tpu_custom_call.1} parent=1 // pred_fallthru
      _
    // Predicated region
    $region26: #{tpu_custom_call.1} parent=1 // pred_check
      _
    $region27: #{tpu_custom_call.1} parent=1 // pred_check_branch
      %36 = sbr.rel (0) target = $region29
    $region28: #{tpu_custom_call.1} parent=1 // pred_region
      %37 = dma.done [#allocation3], 1024
    $region29: #{tpu_custom_call.1} parent=1 // pred_fallthru
      _
    %v39 = vld [vmem:[%s0] sm:$0xf]
    %v40 = vld [vmem:[#allocation2] sm:$0xff]
    %v41 = vld [vmem:[#allocation2 + $0x8] sm:$0xff]
    %v42 = vld [vmem:[#allocation2 + $0x10] sm:$0xff]
    %v43 = vld [vmem:[#allocation2 + $0x18] sm:$0xff]
    %v44 = vld [vmem:[#allocation2 + $0x20] sm:$0xff]
    %v45 = vld [vmem:[#allocation2 + $0x28] sm:$0xff]
    %v46 = vld [vmem:[#allocation2 + $0x30] sm:$0xff]
    %v47 = vld [vmem:[#allocation2 + $0x38] sm:$0xff]
    %v56 = vunpack.c.l.b16 %v40
    %v57 = vunpack.c.h.b16 %v40
    %v58 = vunpack.c.l.b16 %v41
    %v59 = vunpack.c.h.b16 %v41
    %v60 = vunpack.c.l.b16 %v42
    %v61 = vunpack.c.h.b16 %v42
    %v62 = vunpack.c.l.b16 %v43
    %v63 = vunpack.c.h.b16 %v43
    %v64 = vunpack.c.l.b16 %v44
    %v65 = vunpack.c.h.b16 %v44
    %v66 = vunpack.c.l.b16 %v45
    %v67 = vunpack.c.h.b16 %v45
    %v68 = vunpack.c.l.b16 %v46
    %v69 = vunpack.c.h.b16 %v46
    %v70 = vunpack.c.l.b16 %v47
    %v71 = vunpack.c.h.b16 %v47
    %v72 = vpack.c.b16 %v60, %v56
    %v73 = vpack.c.b16 %v61, %v57
    %v74 = vpack.c.b16 %v62, %v58
    %v75 = vpack.c.b16 %v63, %v59
    %v76 = vpack.c.b16 %v68, %v64
    %v77 = vpack.c.b16 %v69, %v65
    %v78 = vpack.c.b16 %v70, %v66
    %v79 = vpack.c.b16 %v71, %v67
    %vm88 = vcmask 261120
    %v90 = vsel %vm88, %v39, 0
    %92 = vmatprep.subr.bf16.mxu0 %v73
    %93 = vmatpush1.bf16.msra.mxu0 %v72
    %94 = vmatprep.subr.bf16.mxu0 %v77
    %95 = vmatpush1.bf16.msra.mxu0 %v76
    %96 = vmatprep.subr.bf16.mxu0 0
    %97 = vmatpush1.bf16.msra.mxu0 0
    %98 = vmatprep.subr.bf16.mxu0 0
    %99 = vmatpush1.bf16.msra.mxu0 0
    %100 = vmatprep.subr.bf16.mxu0 0
    %101 = vmatpush1.bf16.msra.mxu0 0
    %102 = vmatprep.subr.bf16.mxu0 0
    %103 = vmatpush1.bf16.msra.mxu0 0
    %104 = vmatprep.subr.bf16.mxu0 0
    %105 = vmatpush1.bf16.msra.mxu0 0
    %106 = vmatprep.subr.bf16.mxu0 0
    %107 = vmatpush1.bf16.msra.mxu0 0
    %108 = vmatprep.subr.bf16.mxu0 0
    %109 = vmatpush1.bf16.msra.mxu0 0
    %110 = vmatprep.subr.bf16.mxu0 0
    %111 = vmatpush1.bf16.msra.mxu0 0
    %112 = vmatprep.subr.bf16.mxu0 0
    %113 = vmatpush1.bf16.msra.mxu0 0
    %114 = vmatprep.subr.bf16.mxu0 0
    %115 = vmatpush1.bf16.msra.mxu0 0
    %116 = vmatprep.subr.bf16.mxu0 0
    %117 = vmatpush1.bf16.msra.mxu0 0
    %118 = vmatprep.subr.bf16.mxu0 0
    %119 = vmatpush1.bf16.msra.mxu0 0
    %120 = vmatprep.subr.bf16.mxu0 0
    %121 = vmatpush1.bf16.msra.mxu0 0
    %122 = vmatprep.subr.bf16.mxu0 0
    %123 = vmatpush1.bf16.msra.mxu0 0
    %124 = vmatprep.mubr.bf16.mxu0 0
    %125 = vmatmul.mubr.bf16.gmra.mrb[0].mxu0 %v90
    %v126 = vpop.f32.mrb[0].mxu0
    %v127 = vadd.f32 0.0, %v126
    %v128 = vpop.f32.mrb[0].mxu0
    %v129 = vadd.f32 0.0, %v128
    %v130 = vpop.f32.mrb[0].mxu0
    %v131 = vpop.f32.mrb[0].mxu0
    %132 = vdwg.mxu0
    %133 = vmatprep.subr.bf16.mxu0 %v75
    %134 = vmatpush1.bf16.msra.mxu0 %v74
    %135 = vmatprep.subr.bf16.mxu0 %v79
    %136 = vmatpush1.bf16.msra.mxu0 %v78
    %137 = vmatprep.subr.bf16.mxu0 0
    %138 = vmatpush1.bf16.msra.mxu0 0
    %139 = vmatprep.subr.bf16.mxu0 0
    %140 = vmatpush1.bf16.msra.mxu0 0
    %141 = vmatprep.subr.bf16.mxu0 0
    %142 = vmatpush1.bf16.msra.mxu0 0
    %143 = vmatprep.subr.bf16.mxu0 0
    %144 = vmatpush1.bf16.msra.mxu0 0
    %145 = vmatprep.subr.bf16.mxu0 0
    %146 = vmatpush1.bf16.msra.mxu0 0
    %147 = vmatprep.subr.bf16.mxu0 0
    %148 = vmatpush1.bf16.msra.mxu0 0
    %149 = vmatprep.subr.bf16.mxu0 0
    %150 = vmatpush1.bf16.msra.mxu0 0
    %151 = vmatprep.subr.bf16.mxu0 0
    %152 = vmatpush1.bf16.msra.mxu0 0
    %153 = vmatprep.subr.bf16.mxu0 0
    %154 = vmatpush1.bf16.msra.mxu0 0
    %155 = vmatprep.subr.bf16.mxu0 0
    %156 = vmatpush1.bf16.msra.mxu0 0
    %157 = vmatprep.subr.bf16.mxu0 0
    %158 = vmatpush1.bf16.msra.mxu0 0
    %159 = vmatprep.subr.bf16.mxu0 0
    %160 = vmatpush1.bf16.msra.mxu0 0
    %161 = vmatprep.subr.bf16.mxu0 0
    %162 = vmatpush1.bf16.msra.mxu0 0
    %163 = vmatprep.subr.bf16.mxu0 0
    %164 = vmatpush1.bf16.msra.mxu0 0
    %165 = vmatprep.mubr.bf16.mxu0 0
    %166 = vmatmul.mubr.bf16.gmra.mrb[0].mxu0 %v90
    %v167 = vpop.f32.mrb[0].mxu0
    %v168 = vadd.f32 0.0, %v167
    %v169 = vpop.f32.mrb[0].mxu0
    %v170 = vadd.f32 0.0, %v169
    %v171 = vpop.f32.mrb[0].mxu0
    %v172 = vpop.f32.mrb[0].mxu0
    %173 = vdwg.mxu0
    %v174 = vld [vmem:[%s2] sm:$0xf]
    %v176 = vlaneseq
    %v177 = vshrl.u32 %v176, 7
    %v178 = vsub.s32 0, %v177
    %v179 = vrot.slane %v174, %v178
    %v180 = vlaneseq
    %v181 = vshrl.u32 %v180, 7
    %v182 = vsub.s32 1, %v181
    %v183 = vrot.slane %v174, %v182
    %v184 = vlaneseq
    %v185 = vshrl.u32 %v184, 7
    %v186 = vsub.s32 2, %v185
    %v187 = vrot.slane %v174, %v186
    %v188 = vlaneseq
    %v189 = vshrl.u32 %v188, 7
    %v190 = vsub.s32 3, %v189
    %v191 = vrot.slane %v174, %v190
    %v196 = vmul.f32 %v127, %v179
    %v197 = vmul.f32 %v129, %v183
    %v198 = vmul.f32 %v168, %v187
    %v199 = vmul.f32 %v170, %v191
    %v200 = vmax.f32 %v196, -0.999
    %v201 = vmax.f32 %v197, -0.999
    %v202 = vmax.f32 %v198, -0.999
    %v203 = vmax.f32 %v199, -0.999
    %v204 = vmin.f32 %v200, 0.999
    %v205 = vmin.f32 %v201, 0.999
    %v206 = vmin.f32 %v202, 0.999
    %v207 = vmin.f32 %v203, 0.999
    %v208 = vld [vmem:[%s3] sm:$0xf]
    %v209 = vld [vmem:[%s4] sm:$0xff]
    %v210 = vlaneseq
    %v211 = vshrl.u32 %v210, 7
    %v212 = vsub.s32 0, %v211
    %v213 = vrot.slane %v208, %v212
    %vm214 = vcmp.ge.s32.totalorder %v209, %v213
    %v215 = vadd.s32 %v208, 512
    %v216 = vlaneseq
    %v217 = vshrl.u32 %v216, 7
    %v218 = vsub.s32 0, %v217
    %v219 = vrot.slane %v215, %v218
    %vm220 = vcmp.lt.s32.totalorder %v209, %v219
    %vm221 = vmand %vm214, %vm220
    %v222 = vsel %vm221, 1, 0
    %vm223 = vcmask 7168
    %v224 = vsel %vm223, %v222, 0
    %v225 = vand.u32 %v224, 65535
    %v226 = vshrl.u32 %v224, 16
    %v227 = vcvt.s32.f32 %v225
    %v228 = vcvt.s32.f32 %v226
    %229 = vadd.xlane.f32.xlu0 %v227
    %v230 = vpop.xlane.xlu0 %229
    %231 = vadd.xlane.f32.xlu0 %v228
    %v232 = vpop.xlane.xlu0 %231
    %v233 = vcvt.f32.s32 %v230
    %v234 = vcvt.f32.s32 %v232
    %v235 = vshll.u32 %v234, 16
    %v236 = vadd.s32 %v235, %v233
    %v237 = vrot.slane %v236, 4
    %v238 = vadd.s32 %v236, %v237
    %v239 = vrot.slane %v238, 2
    %v240 = vadd.s32 %v238, %v239
    %v241 = vrot.slane %v240, 1
    %v242 = vadd.s32 %v240, %v241
    %s243 = vtos %v242
    %p244 = scmp.gt.s32.totalorder %s243, 0
    %p245 = scmp.le.s32.totalorder %s243, 0
    // Predicated region
    $region30: #{tpu_custom_call.1} parent=1 // pred_check
      %p246 = pneg %p245
    $region31: #{tpu_custom_call.1} parent=1 // pred_check_branch
      %248 = sbr.rel (%p246) target = $region33
    $region32: #{tpu_custom_call.1} parent=1 // pred_region
      %v249 = vmul.f32 %v204, 64.0
      %v250 = vmul.f32 %v205, 64.0
      %v251 = vmul.f32 %v206, 64.0
      %v252 = vmul.f32 %v207, 64.0
      %253 = vst [vmem:[#allocation5] sm:$0xff] %v249
      %254 = vst [vmem:[#allocation5 + $0x8] sm:$0xff] %v250
      %255 = vst [vmem:[#allocation5 + $0x10] sm:$0xff] %v251
      %256 = vst [vmem:[#allocation5 + $0x18] sm:$0xff] %v252
    $region33: #{tpu_custom_call.1} parent=1 // pred_fallthru
      _
    // Predicated region
    $region34: #{tpu_custom_call.1} parent=1 // pred_check
      %p257 = pneg %p244
    $region35: #{tpu_custom_call.1} parent=1 // pred_check_branch
      %259 = sbr.rel (%p257) target = $region37
    $region36: #{tpu_custom_call.1} parent=1 // pred_region
      %v260 = vlaneseq
      %v261 = vshrl.u32 %v260, 7
      %v262 = vsub.s32 1, %v261
      %v263 = vrot.slane %v208, %v262
      %v264 = vlaneseq
      %v265 = vshrl.u32 %v264, 7
      %v266 = vsub.s32 2, %v265
      %v267 = vrot.slane %v208, %v266
      %v268 = vlaneseq
      %v269 = vshrl.u32 %v268, 7
      %v270 = vsub.s32 3, %v269
      %v271 = vrot.slane %v208, %v270
      %272 = vset.pattern.permute.xlu0 0
      %273 = vperm.xlu0 %272, %v209
      %v274 = vpop.permute.xlu0 %273
      %vm275 = vcmp.eq.s32.totalorder %v213, %v274
      %vm276 = vcmp.eq.s32.totalorder %v263, %v274
      %vm277 = vcmp.eq.s32.totalorder %v267, %v274
      %vm278 = vcmp.eq.s32.totalorder %v271, %v274
      %v279 = vld [vmem:[%s5] sm:$0xff]
      %281 = vset.pattern.permute.xlu0 0
      %282 = vperm.xlu0 %281, %v279
      %v283 = vpop.permute.xlu0 %282
      %v285 = vsel %vm275, %v283, 1.0
      %v286 = vsel %vm276, %v283, 1.0
      %v287 = vsel %vm277, %v283, 1.0
      %v288 = vsel %vm278, %v283, 1.0
      %289 = vset.pattern.permute.xlu0 1
      %290 = vperm.xlu0 %289, %v279
      %v291 = vpop.permute.xlu0 %290
      %v293 = vsel %vm275, %v291, 0.0
      %v294 = vsel %vm276, %v291, 0.0
      %v295 = vsel %vm277, %v291, 0.0
      %v296 = vsel %vm278, %v291, 0.0
      %297 = vset.pattern.permute.xlu0 2
      %298 = vperm.xlu0 %297, %v279
      %v299 = vpop.permute.xlu0 %298
      %v301 = vsel %vm275, %v299, 2.0
      %v302 = vsel %vm276, %v299, 2.0
      %v303 = vsel %vm277, %v299, 2.0
      %v304 = vsel %vm278, %v299, 2.0
      %305 = vset.pattern.permute.xlu0 3
      %306 = vperm.xlu0 %305, %v279
      %v307 = vpop.permute.xlu0 %306
      %v309 = vsel %vm275, %v307, -2.0
      %v310 = vsel %vm276, %v307, -2.0
      %v311 = vsel %vm277, %v307, -2.0
      %v312 = vsel %vm278, %v307, -2.0
      %313 = vset.pattern.permute.xlu0 4
      %314 = vperm.xlu0 %313, %v279
      %v315 = vpop.permute.xlu0 %314
      %v317 = vsel %vm275, %v315, 0.0
      %v318 = vsel %vm276, %v315, 0.0
      %v319 = vsel %vm277, %v315, 0.0
      %v320 = vsel %vm278, %v315, 0.0
      %v321 = vmul.f32 %v204, %v204
      %v322 = vmul.f32 %v205, %v205
      %v323 = vmul.f32 %v206, %v206
      %v324 = vmul.f32 %v207, %v207
      %v325 = vsub.f32 1.0, %v321
      %v326 = vsub.f32 1.0, %v322
      %v327 = vsub.f32 1.0, %v323
      %v328 = vsub.f32 1.0, %v324
      %v329 = vmax.f32 %v325, 0.0
      %v330 = vmax.f32 %v326, 0.0
      %v331 = vmax.f32 %v327, 0.0
      %v332 = vmax.f32 %v328, 0.0
      %v333 = vrsqrt.pop %v329
      %v334 = vmul.f32 %v329, %v333
      %vm335 = vcmp.eq.f32.partialorder %v329, inf
      %v336 = vsel %vm335, %v329, %v334
      %vm337 = vcmp.eq.f32.partialorder %v329, 0.0
      %v338 = vand.u32 %v329, 2147483648
      %v339 = vsel %vm337, %v338, %v336
      %v340 = vrsqrt.pop %v330
      %v341 = vmul.f32 %v330, %v340
      %vm342 = vcmp.eq.f32.partialorder %v330, inf
      %v343 = vsel %vm342, %v330, %v341
      %vm344 = vcmp.eq.f32.partialorder %v330, 0.0
      %v345 = vand.u32 %v330, 2147483648
      %v346 = vsel %vm344, %v345, %v343
      %v347 = vrsqrt.pop %v331
      %v348 = vmul.f32 %v331, %v347
      %vm349 = vcmp.eq.f32.partialorder %v331, inf
      %v350 = vsel %vm349, %v331, %v348
      %vm351 = vcmp.eq.f32.partialorder %v331, 0.0
      %v352 = vand.u32 %v331, 2147483648
      %v353 = vsel %vm351, %v352, %v350
      %v354 = vrsqrt.pop %v332
      %v355 = vmul.f32 %v332, %v354
      %vm356 = vcmp.eq.f32.partialorder %v332, inf
      %v357 = vsel %vm356, %v332, %v355
      %vm358 = vcmp.eq.f32.partialorder %v332, 0.0
      %v359 = vand.u32 %v332, 2147483648
      %v360 = vsel %vm358, %v359, %v357
      %v361 = vmul.f32 %v204, %v285
      %v362 = vmul.f32 %v205, %v286
      %v363 = vmul.f32 %v206, %v287
      %v364 = vmul.f32 %v207, %v288
      %v365 = vmul.f32 %v339, %v293
      %v366 = vmul.f32 %v346, %v294
      %v367 = vmul.f32 %v353, %v295
      %v368 = vmul.f32 %v360, %v296
      %v369 = vsub.f32 %v361, %v365
      %v370 = vsub.f32 %v362, %v366
      %v371 = vsub.f32 %v363, %v367
      %v372 = vsub.f32 %v364, %v368
      %vm373 = vcmp.gt.f32.partialorder %v204, %v301
      %vm374 = vcmp.gt.f32.partialorder %v205, %v302
      %vm375 = vcmp.gt.f32.partialorder %v206, %v303
      %vm376 = vcmp.gt.f32.partialorder %v207, %v304
      %v377 = vsel %vm373, 0.9999995, %v369
      %v378 = vsel %vm374, 0.9999995, %v370
      %v379 = vsel %vm375, 0.9999995, %v371
      %v380 = vsel %vm376, 0.9999995, %v372
      %vm381 = vcmp.lt.f32.partialorder %v204, %v309
      %vm382 = vcmp.lt.f32.partialorder %v205, %v310
      %vm383 = vcmp.lt.f32.partialorder %v206, %v311
      %vm384 = vcmp.lt.f32.partialorder %v207, %v312
      %v385 = vsel %vm381, -0.9999995, %v377
      %v386 = vsel %vm382, -0.9999995, %v378
      %v387 = vsel %vm383, -0.9999995, %v379
      %v388 = vsel %vm384, -0.9999995, %v380
      %v389 = vsub.f32 %v385, %v317
      %v390 = vsub.f32 %v386, %v318
      %v391 = vsub.f32 %v387, %v319
      %v392 = vsub.f32 %v388, %v320
      %v393 = vmul.f32 %v389, 64.0
      %v394 = vmul.f32 %v390, 64.0
      %v395 = vmul.f32 %v391, 64.0
      %v396 = vmul.f32 %v392, 64.0
      %397 = vst [vmem:[#allocation5] sm:$0xff] %v393
      %398 = vst [vmem:[#allocation5 + $0x8] sm:$0xff] %v394
      %399 = vst [vmem:[#allocation5 + $0x10] sm:$0xff] %v395
      %400 = vst [vmem:[#allocation5 + $0x18] sm:$0xff] %v396
    $region37: #{tpu_custom_call.1} parent=1 // pred_fallthru
      _
    // Predicated region
    $region38: #{tpu_custom_call.1} parent=1 // pred_check
      _
    $region39: #{tpu_custom_call.1} parent=1 // pred_check_branch
      %402 = sbr.rel (0) target = $region41
    $region40: #{tpu_custom_call.1} parent=1 // pred_region
      %s404 = ssub.s32 512, 512
      %405 = vsyncadd [#allocation4], %s404
      %s407 = sshll.u32 [#allocation5], 4
      %s408 = int_to_ptr.vmem [resolvable:$true] %s407
      %410 = dma.vmem_to_hbm [thread:$0]  %s408, 512, %s6, [#allocation4]
    $region41: #{tpu_custom_call.1} parent=1 // pred_fallthru
      _
    // Predicated region
    $region42: #{tpu_custom_call.1} parent=1 // pred_check
      _
    $region43: #{tpu_custom_call.1} parent=1 // pred_check_branch
      %412 = sbr.rel (0) target = $region45
    $region44: #{tpu_custom_call.1} parent=1 // pred_region
      %413 = dma.done [#allocation4], 512
    $region45: #{tpu_custom_call.1} parent=1 // pred_fallthru
      _
    %414 = vsyncpa [#allocation3], 1
    %415 = vsyncpa [#allocation4], 1

</llo_original>
